<compile_context>
chip_gen: v6e
topology: v6e:2x2x1
jax: 0.10.0
libtpu: 0.0.40
codegen_flags: <defaults>
</compile_context>

<pallas_src>
import functools

import jax
import jax.numpy as jnp
from jax.experimental import pallas as pl
from jax.experimental.pallas import tpu as pltpu


def _distill_kernel(s_ref, t_ref, lbl_ref, out_ref, acc_ref, *, alpha,
                    temperature, label_smoothing, n_total):
    i = pl.program_id(0)

    # ---- init the resident accumulator on the first grid step
    @pl.when(i == 0)
    def _():
        acc_ref[0] = 0.0

    # Cast to f32 in-kernel (keep vector math in f32: required on v5e, fine elsewhere).
    s = s_ref[...].astype(jnp.float32)   # (tile_n, C) student logits
    t = t_ref[...].astype(jnp.float32)   # (tile_n, C) teacher logits
    tn, c = s.shape
    inv_t = 1.0 / temperature

    # Row-validity mask for the (possibly partial) last tile.
    row = i * tn + jax.lax.broadcasted_iota(jnp.int32, (tn, 1), 0)
    valid = row < n_total                                          # (tile_n, 1)

    # ---- soft loss: KLDiv(log_softmax(s/T), softmax(t/T)), reduction='batchmean'
    # Reduced form: KL_row = sum_c e_t*(z_t - z_s)/sum_t + log(sum_s) - log(sum_t)
    s_T = s * inv_t
    t_T = t * inv_t
    z_s = s_T - jnp.max(s_T, axis=-1, keepdims=True)
    z_t = t_T - jnp.max(t_T, axis=-1, keepdims=True)
    e_t = jnp.exp(z_t)
    sum_s = jnp.sum(jnp.exp(z_s), axis=-1, keepdims=True)          # (tile_n, 1)
    sum_t = jnp.sum(e_t, axis=-1, keepdims=True)                   # (tile_n, 1)
    inner = jnp.sum(e_t * (z_t - z_s), axis=-1, keepdims=True)     # (tile_n, 1)
    kl_row = inner * pl.reciprocal(sum_t) + jnp.log(sum_s) - jnp.log(sum_t)

    # ---- hard loss: CrossEntropy(student, labels) with label smoothing,
    #      decomposed: ce_row = lse(s) - (1-eps)*s[y] - (eps/C)*sum_c s
    m1 = jnp.max(s, axis=-1, keepdims=True)
    lse = m1 + jnp.log(jnp.sum(jnp.exp(s - m1), axis=-1, keepdims=True))
    lbl = lbl_ref[...]                                             # (tile_n, 1) int32
    cls = jax.lax.broadcasted_iota(jnp.int32, (tn, c), 1)          # (tile_n, C)
    s_y = jnp.sum(jnp.where(cls == lbl, s, 0.0), axis=-1, keepdims=True)
    s_sum = jnp.sum(s, axis=-1, keepdims=True)
    eps = label_smoothing
    ce_row = lse - (1.0 - eps) * s_y - (eps / c) * s_sum

    # ---- weighted, masked per-tile partial sum into the single SMEM scalar
    tile_part = jnp.sum(
        jnp.where(valid, alpha * ce_row + (1.0 - alpha) * kl_row, 0.0))
    acc_ref[0] += tile_part

    # ---- finalize once on the last grid step
    @pl.when(i == pl.num_programs(0) - 1)
    def _():
        out_ref[0, 0] = acc_ref[0] * (1.0 / float(n_total))


def _pick_tile_n(n, c, itemsize, target_bytes=2 << 20):
    """Rows per tile s.t. 2 logits inputs x 2 pipeline buffers stay well under
    scoped VMEM (conservative for v5e 16 MiB / v7x 64 MiB physical)."""
    rows = max(8, target_bytes // max(1, c * itemsize))
    rows = int(rows) - int(rows) % 8
    rows = max(8, rows)
    return n if rows >= n else rows


def distillation_loss(student_logits, teacher_logits, labels, *, alpha=0.5,
                      temperature=3.0, label_smoothing=0.1, tile_n=None):
    n, c = student_logits.shape
    labels2d = labels.astype(jnp.int32).reshape(n, 1)

    # Pass logits in their native dtype (e.g. bf16) — cast happens in-kernel.
    if tile_n is None:
        tile_n = _pick_tile_n(n, c, student_logits.dtype.itemsize)
    tile_n = min(int(tile_n), n)
    if tile_n != n and tile_n % 8 != 0:
        tile_n = max(8, tile_n - tile_n % 8)
    grid = (pl.cdiv(n, tile_n),)

    kernel = functools.partial(
        _distill_kernel,
        alpha=float(alpha),
        temperature=float(temperature),
        label_smoothing=float(label_smoothing),
        n_total=n,
    )

    out = pl.pallas_call(
        kernel,
        out_shape=jax.ShapeDtypeStruct((1, 1), jnp.float32),
        grid=grid,
        in_specs=[
            pl.BlockSpec((tile_n, c), lambda i: (i, 0)),
            pl.BlockSpec((tile_n, c), lambda i: (i, 0)),
            pl.BlockSpec((tile_n, 1), lambda i: (i, 0)),
        ],
        out_specs=pl.BlockSpec(memory_space=pltpu.SMEM),
        scratch_shapes=[pltpu.SMEM((1,), jnp.float32)],
        compiler_params=pltpu.CompilerParams(
            dimension_semantics=("arbitrary",)),
    )(student_logits, teacher_logits, labels2d)
    # TODO(synk): for v7x dual-TC, emit per-tile partials on a "parallel" axis and
    # sum outside instead of the single resident SMEM accumulator.
    return out[0, 0]


if __name__ == "__main__":
    key = jax.random.PRNGKey(0)
    k1, k2, k3 = jax.random.split(key, 3)

    # Small, lane-dense shapes; N deliberately NOT a multiple of the tile so the
    # edge-tile masking path is exercised (grid = 3 tiles of 8 rows).
    N, C = 20, 128
    student = jax.random.normal(k1, (N, C), dtype=jnp.float32)
    teacher = jax.random.normal(k2, (N, C), dtype=jnp.float32)
    labels = jax.random.randint(k3, (N,), 0, C, dtype=jnp.int32)

    loss = distillation_loss(student, teacher, labels,
                             alpha=0.5, temperature=3.0, label_smoothing=0.1,
                             tile_n=8)
    jax.block_until_ready(loss)

    # pure-JAX reference check (matches the PyTorch module: no T^2 scaling of KL)
    def ref_loss(s, t, y, alpha=0.5, T=3.0, eps=0.1):
        lp_s_T = jax.nn.log_softmax(s / T, axis=1)
        lp_t_T = jax.nn.log_softmax(t / T, axis=1)
        p_t = jnp.exp(lp_t_T)
        soft = jnp.sum(p_t * (lp_t_T - lp_s_T)) / s.shape[0]
        lp_s = jax.nn.log_softmax(s, axis=1)
        q = jax.nn.one_hot(y, s.shape[1]) * (1.0 - eps) + eps / s.shape[1]
        hard = jnp.mean(-jnp.sum(q * lp_s, axis=1))
        return alpha * hard + (1 - alpha) * soft

    ref = ref_loss(student, teacher, labels)
    assert jnp.allclose(loss, ref, atol=1e-5, rtol=1e-5), (loss, ref)

    print("KERNEL_OK")
</pallas_src>

<mosaic_0001>
module attributes {stable_mosaic.version = 11 : i64} {
  func.func @_distill_kernel(%arg0: i32, %arg1: memref<8x128xf32, #tpu.memory_space<vmem>>, %arg2: memref<8x128xf32, #tpu.memory_space<vmem>>, %arg3: memref<8x1xi32, #tpu.memory_space<vmem>>, %arg4: memref<1x1xf32, #tpu.memory_space<smem>>, %arg5: memref<1xf32, #tpu.memory_space<smem>>) attributes {dimension_semantics = [#tpu.dimension_semantics<arbitrary>], iteration_bounds = array<i64: 3>, scalar_prefetch = 0 : i64, scratch_operands = 1 : i64, tpu.core_type = #tpu.core_type<tc>, window_params = [{transform_indices = @transform_0, window_bounds = array<i64: 8, 128>}, {transform_indices = @transform_1, window_bounds = array<i64: 8, 128>}, {transform_indices = @transform_2, window_bounds = array<i64: 8, 1>}, {transform_indices = @transform_3, window_bounds = array<i64: 1, 1>}]} {
    %c0_i32 = arith.constant 0 : i32
    %0 = arith.cmpi eq, %arg0, %c0_i32 : i32
    %1 = arith.extui %0 : i1 to i32
    %c0_i32_0 = arith.constant 0 : i32
    %2 = arith.cmpi ne, %1, %c0_i32_0 : i32
    scf.if %2 {
      %cst_26 = arith.constant 0.000000e+00 : f32
      %c0_27 = arith.constant 0 : index
      %81 = memref.load %arg5[%c0_27] : memref<1xf32, #tpu.memory_space<smem>>
      memref.store %cst_26, %arg5[%c0_27] : memref<1xf32, #tpu.memory_space<smem>>
    } else {
    }
    %c0 = arith.constant 0 : index
    %c0_1 = arith.constant 0 : index
    %3 = vector.load %arg1[%c0, %c0_1] : memref<8x128xf32, #tpu.memory_space<vmem>>, vector<8x128xf32>
    %c0_2 = arith.constant 0 : index
    %c0_3 = arith.constant 0 : index
    %4 = vector.load %arg2[%c0_2, %c0_3] : memref<8x128xf32, #tpu.memory_space<vmem>>, vector<8x128xf32>
    %c8_i32 = arith.constant 8 : i32
    %5 = arith.muli %arg0, %c8_i32 : i32
    %6 = tpu.iota {dimensions = array<i32: 0>} : vector<8x1xi32>
    %7 = vector.broadcast %5 : i32 to vector<8x1xi32>
    %8 = arith.addi %7, %6 : vector<8x1xi32>
    %c20_i32 = arith.constant 20 : i32
    %9 = vector.broadcast %c20_i32 : i32 to vector<8x1xi32>
    %10 = arith.cmpi slt, %8, %9 : vector<8x1xi32>
    %cst = arith.constant 0.333333343 : f32
    %11 = vector.broadcast %cst : f32 to vector<8x128xf32>
    %12 = arith.mulf %3, %11 : vector<8x128xf32>
    %cst_4 = arith.constant 0.333333343 : f32
    %13 = vector.broadcast %cst_4 : f32 to vector<8x128xf32>
    %14 = arith.mulf %4, %13 : vector<8x128xf32>
    %cst_5 = arith.constant dense<0xFF800000> : vector<8xf32>
    %15 = vector.multi_reduction <maximumf>, %12, %cst_5 [1] : vector<8x128xf32> to vector<8xf32>
    %16 = vector.shape_cast %15 : vector<8xf32> to vector<8x1xf32>
    %17 = vector.broadcast %16 : vector<8x1xf32> to vector<8x128xf32>
    %18 = arith.subf %12, %17 : vector<8x128xf32>
    %cst_6 = arith.constant dense<0xFF800000> : vector<8xf32>
    %19 = vector.multi_reduction <maximumf>, %14, %cst_6 [1] : vector<8x128xf32> to vector<8xf32>
    %20 = vector.shape_cast %19 : vector<8xf32> to vector<8x1xf32>
    %21 = vector.broadcast %20 : vector<8x1xf32> to vector<8x128xf32>
    %22 = arith.subf %14, %21 : vector<8x128xf32>
    %23 = math.exp %22 : vector<8x128xf32>
    %24 = math.exp %18 : vector<8x128xf32>
    %cst_7 = arith.constant dense<0.000000e+00> : vector<8xf32>
    %25 = vector.multi_reduction <add>, %24, %cst_7 [1] : vector<8x128xf32> to vector<8xf32>
    %26 = vector.shape_cast %25 : vector<8xf32> to vector<8x1xf32>
    %cst_8 = arith.constant dense<0.000000e+00> : vector<8xf32>
    %27 = vector.multi_reduction <add>, %23, %cst_8 [1] : vector<8x128xf32> to vector<8xf32>
    %28 = vector.shape_cast %27 : vector<8xf32> to vector<8x1xf32>
    %29 = arith.subf %22, %18 : vector<8x128xf32>
    %30 = arith.mulf %23, %29 : vector<8x128xf32>
    %cst_9 = arith.constant dense<0.000000e+00> : vector<8xf32>
    %31 = vector.multi_reduction <add>, %30, %cst_9 [1] : vector<8x128xf32> to vector<8xf32>
    %32 = vector.shape_cast %31 : vector<8xf32> to vector<8x1xf32>
    %33 = tpu.reciprocal %28 : vector<8x1xf32> -> vector<8x1xf32>
    %34 = arith.mulf %32, %33 : vector<8x1xf32>
    %35 = math.log %26 : vector<8x1xf32>
    %36 = arith.addf %34, %35 : vector<8x1xf32>
    %37 = math.log %28 : vector<8x1xf32>
    %38 = arith.subf %36, %37 : vector<8x1xf32>
    %cst_10 = arith.constant dense<0xFF800000> : vector<8xf32>
    %39 = vector.multi_reduction <maximumf>, %3, %cst_10 [1] : vector<8x128xf32> to vector<8xf32>
    %40 = vector.shape_cast %39 : vector<8xf32> to vector<8x1xf32>
    %41 = vector.broadcast %40 : vector<8x1xf32> to vector<8x128xf32>
    %42 = arith.subf %3, %41 : vector<8x128xf32>
    %43 = math.exp %42 : vector<8x128xf32>
    %cst_11 = arith.constant dense<0.000000e+00> : vector<8xf32>
    %44 = vector.multi_reduction <add>, %43, %cst_11 [1] : vector<8x128xf32> to vector<8xf32>
    %45 = vector.shape_cast %44 : vector<8xf32> to vector<8x1xf32>
    %46 = math.log %45 : vector<8x1xf32>
    %47 = arith.addf %40, %46 : vector<8x1xf32>
    %c0_12 = arith.constant 0 : index
    %c0_13 = arith.constant 0 : index
    %48 = vector.load %arg3[%c0_12, %c0_13] : memref<8x1xi32, #tpu.memory_space<vmem>>, vector<8x1xi32>
    %49 = tpu.iota {dimensions = array<i32: 1>} : vector<8x128xi32>
    %50 = vector.broadcast %48 : vector<8x1xi32> to vector<8x128xi32>
    %51 = arith.cmpi eq, %49, %50 : vector<8x128xi32>
    %cst_14 = arith.constant 0.000000e+00 : f32
    %52 = vector.broadcast %cst_14 : f32 to vector<8x128xf32>
    %53 = arith.select %51, %3, %52 : vector<8x128xi1>, vector<8x128xf32>
    %cst_15 = arith.constant dense<0.000000e+00> : vector<8xf32>
    %54 = vector.multi_reduction <add>, %53, %cst_15 [1] : vector<8x128xf32> to vector<8xf32>
    %55 = vector.shape_cast %54 : vector<8xf32> to vector<8x1xf32>
    %cst_16 = arith.constant dense<0.000000e+00> : vector<8xf32>
    %56 = vector.multi_reduction <add>, %3, %cst_16 [1] : vector<8x128xf32> to vector<8xf32>
    %57 = vector.shape_cast %56 : vector<8xf32> to vector<8x1xf32>
    %cst_17 = arith.constant 0.899999976 : f32
    %58 = vector.broadcast %cst_17 : f32 to vector<8x1xf32>
    %59 = arith.mulf %58, %55 : vector<8x1xf32>
    %60 = arith.subf %47, %59 : vector<8x1xf32>
    %cst_18 = arith.constant 7.812500e-04 : f32
    %61 = vector.broadcast %cst_18 : f32 to vector<8x1xf32>
    %62 = arith.mulf %61, %57 : vector<8x1xf32>
    %63 = arith.subf %60, %62 : vector<8x1xf32>
    %cst_19 = arith.constant 5.000000e-01 : f32
    %64 = vector.broadcast %cst_19 : f32 to vector<8x1xf32>
    %65 = arith.mulf %64, %63 : vector<8x1xf32>
    %cst_20 = arith.constant 5.000000e-01 : f32
    %66 = vector.broadcast %cst_20 : f32 to vector<8x1xf32>
    %67 = arith.mulf %66, %38 : vector<8x1xf32>
    %68 = arith.addf %65, %67 : vector<8x1xf32>
    %cst_21 = arith.constant 0.000000e+00 : f32
    %69 = vector.broadcast %cst_21 : f32 to vector<8x1xf32>
    %70 = arith.select %10, %68, %69 : vector<8x1xi1>, vector<8x1xf32>
    %71 = vector.shape_cast %70 : vector<8x1xf32> to vector<1x8x1xf32>
    %cst_22 = arith.constant dense<0.000000e+00> : vector<1xf32>
    %72 = vector.multi_reduction <add>, %71, %cst_22 [1, 2] : vector<1x8x1xf32> to vector<1xf32>
    %73 = vector.shape_cast %72 : vector<1xf32> to vector<1x1x1xf32>
    %74 = vector.extract %73[0, 0, 0] : f32 from vector<1x1x1xf32>
    %c0_23 = arith.constant 0 : index
    %75 = memref.load %arg5[%c0_23] : memref<1xf32, #tpu.memory_space<smem>>
    %76 = arith.addf %75, %74 : f32
    %c0_24 = arith.constant 0 : index
    %77 = memref.load %arg5[%c0_24] : memref<1xf32, #tpu.memory_space<smem>>
    memref.store %76, %arg5[%c0_24] : memref<1xf32, #tpu.memory_space<smem>>
    %c2_i32 = arith.constant 2 : i32
    %78 = arith.cmpi eq, %arg0, %c2_i32 : i32
    %79 = arith.extui %78 : i1 to i32
    %c0_i32_25 = arith.constant 0 : i32
    %80 = arith.cmpi ne, %79, %c0_i32_25 : i32
    scf.if %80 {
      %c0_26 = arith.constant 0 : index
      %81 = memref.load %arg5[%c0_26] : memref<1xf32, #tpu.memory_space<smem>>
      %cst_27 = arith.constant 5.000000e-02 : f32
      %82 = arith.mulf %81, %cst_27 : f32
      %c0_28 = arith.constant 0 : index
      %c0_29 = arith.constant 0 : index
      %83 = memref.load %arg4[%c0_28, %c0_29] : memref<1x1xf32, #tpu.memory_space<smem>>
      memref.store %82, %arg4[%c0_28, %c0_29] : memref<1x1xf32, #tpu.memory_space<smem>>
    } else {
    }
    return
  }
  func.func @transform_0(%arg0: i32) -> (i32, i32) {
    %c0_i32 = arith.constant 0 : i32
    %c0_i32_0 = arith.constant 0 : i32
    return %arg0, %c0_i32 : i32, i32
  }
  func.func @transform_1(%arg0: i32) -> (i32, i32) {
    %c0_i32 = arith.constant 0 : i32
    %c0_i32_0 = arith.constant 0 : i32
    return %arg0, %c0_i32 : i32, i32
  }
  func.func @transform_2(%arg0: i32) -> (i32, i32) {
    %c0_i32 = arith.constant 0 : i32
    %c0_i32_0 = arith.constant 0 : i32
    return %arg0, %c0_i32 : i32, i32
  }
  func.func @transform_3(%arg0: i32) -> (i32, i32) {
    %c0_i32 = arith.constant 0 : i32
    %c0_i32_0 = arith.constant 0 : i32
    %c0_i32_1 = arith.constant 0 : i32
    return %c0_i32, %c0_i32_0 : i32, i32
  }
}

</mosaic_0001>

<llo_original>
// kernel: tpu_custom_call.1
$region0: #{tpu_custom_call.1}
  #allocation0 [shape = 'u32[]', space=smem, size = 0x4, offset = 0x4, fixed_abs, tag = 'smem constant byte address 0x4 - core index']
  #allocation1 [shape = 'u32[144,128]{1,0:T(1,128)}', space=vmem, size = 0x12000, scoped, tag = 'internal scratch']
  #allocation2 [shape = 'f32[1]{0:T(128)}', space=smem, size = 0x200, scoped, tag = 'scratch operand']
  %s0 = inlined_call_operand.vmem [shape: f32[20,128], index: 0, kind: input, shape index: {}]
  %s1 = inlined_call_operand.hbm [shape: f32[20,128], index: 1, kind: input, shape index: {}]
  %s2 = inlined_call_operand.vmem [shape: s32[20,1], index: 2, kind: input, shape index: {}]
  %s3 = inlined_call_operand.hbm [shape: f32[1,1], index: 3, kind: output, shape index: {}]
  %s4 = sld [smem:[#allocation0]]
  $region57: #{tpu_custom_call.1} parent=0
    _
  %s6 = ssub.s32 1, %s4
  %s7 = scalar_select 0, %s6, %s4
  $region1: #{tpu_custom_call.1} parent=0
    #allocation3 [shape = 'u8[8192]{0}', space=vmem, size = 0x2000, scoped, tag = 'input window, operand 1']
    #allocation4 [shape = 's32[2]{0}', space=sflag, size = 0x8, scoped, tag = 'scoped memory for tpu_custom_call.1']
    #allocation5 [shape = 's32[2]{0}', space=sflag, size = 0x8, scoped, tag = 'scoped memory for tpu_custom_call.1']
    #allocation6 [shape = 'u8[512]{0}', space=smem, size = 0x200, scoped, tag = 'output window, operand 0, single buffered']
    %8 = vsyncpa [#allocation4], 0
    %s9 = scalar_lea.sflag [#allocation4], 1
    %10 = vsyncpa %s9, 0
    %11 = vsyncpa [#allocation5], 0
    loop: start=0, step=1, limit=5
    $region2: #{tpu_custom_call.1} parent=1 // loop_pre_header
      _
    $region3: #{tpu_custom_call.1} parent=1 // loop_header
      %s13 = sphi 0, %s17
      %p14 = scmp.ge.s32.totalorder %s13, 5
      %s23 = sphi 0, %s25
      %s26 = sphi 0, %s23
      %s27 = sphi 0, %s26
      %s43 = sphi 0, %s27
      %s49 = sphi 0, %s51
      %s52 = sphi 0, %s49
      %s53 = sphi 0, %s52
      %s69 = sphi 0, %s53
      %s75 = sphi 0, %s77
      %s78 = sphi 0, %s75
      %s79 = sphi 0, %s78
      %s95 = sphi 0, %s79
      %s99 = sphi 0, %s99
      %s101 = sphi 0, %s99
      %s102 = sphi 0, %s101
      %s116 = sphi 0, %s102
    $region4: #{tpu_custom_call.1} parent=1 // loop_header_branch
      %16 = sbr.rel (%p14) target = $region8
    $region5: #{tpu_custom_call.1} parent=1 // loop_body
      %s18 = ssub.s32 %s13, 1
      %s19 = ssub.s32 %s13, 2
      %s20 = sadd.s32 %s13, 1
      %s21 = ssub.s32 %s13, %s20
      %p22 = scmp.eq.s32.totalorder %s21, 0
      %s24 = sadd.s32 %s23, 1
      %s25 = scalar_select %p22, %s23, %s24
      %p28 = pneg %p22
      %p29 = scmp.eq.s32.totalorder %s13, 2
      %p30 = por %p28, %p29
      %p31 = scmp.ne.s32.totalorder %s23, %s26
      %p32 = scmp.eq.s32.totalorder %s13, 0
      %p33 = por %p31, %p32
      %p34 = scmp.ne.s32.totalorder %s23, %s26
      %p35 = scmp.eq.s32.totalorder %s18, 2
      %p36 = por %p34, %p35
      %p37 = scmp.ne.s32.totalorder %s26, %s27
      %p38 = scmp.eq.s32.totalorder %s18, 0
      %p39 = por %p37, %p38
      %p40 = scmp.ne.s32.totalorder %s26, %s27
      %p41 = scmp.eq.s32.totalorder %s19, 2
      %p42 = por %p40, %p41
      %p44 = scmp.ne.s32.totalorder %s27, %s43
      %p45 = scmp.eq.s32.totalorder %s19, 0
      %p46 = por %p44, %p45
      %s47 = ssub.s32 %s13, %s20
      %p48 = scmp.eq.s32.totalorder %s47, 0
      %s50 = sadd.s32 %s49, 1
      %s51 = scalar_select %p48, %s49, %s50
      %p54 = pneg %p48
      %p55 = scmp.eq.s32.totalorder %s13, 2
      %p56 = por %p54, %p55
      %p57 = scmp.ne.s32.totalorder %s49, %s52
      %p58 = scmp.eq.s32.totalorder %s13, 0
      %p59 = por %p57, %p58
      %p60 = scmp.ne.s32.totalorder %s49, %s52
      %p61 = scmp.eq.s32.totalorder %s18, 2
      %p62 = por %p60, %p61
      %p63 = scmp.ne.s32.totalorder %s52, %s53
      %p64 = scmp.eq.s32.totalorder %s18, 0
      %p65 = por %p63, %p64
      %p66 = scmp.ne.s32.totalorder %s52, %s53
      %p67 = scmp.eq.s32.totalorder %s19, 2
      %p68 = por %p66, %p67
      %p70 = scmp.ne.s32.totalorder %s53, %s69
      %p71 = scmp.eq.s32.totalorder %s19, 0
      %p72 = por %p70, %p71
      %s73 = ssub.s32 %s13, %s20
      %p74 = scmp.eq.s32.totalorder %s73, 0
      %s76 = sadd.s32 %s75, 1
      %s77 = scalar_select %p74, %s75, %s76
      %p80 = pneg %p74
      %p81 = scmp.eq.s32.totalorder %s13, 2
      %p82 = por %p80, %p81
      %p83 = scmp.ne.s32.totalorder %s75, %s78
      %p84 = scmp.eq.s32.totalorder %s13, 0
      %p85 = por %p83, %p84
      %p86 = scmp.ne.s32.totalorder %s75, %s78
      %p87 = scmp.eq.s32.totalorder %s18, 2
      %p88 = por %p86, %p87
      %p89 = scmp.ne.s32.totalorder %s78, %s79
      %p90 = scmp.eq.s32.totalorder %s18, 0
      %p91 = por %p89, %p90
      %p92 = scmp.ne.s32.totalorder %s78, %s79
      %p93 = scmp.eq.s32.totalorder %s19, 2
      %p94 = por %p92, %p93
      %p96 = scmp.ne.s32.totalorder %s79, %s95
      %p97 = scmp.eq.s32.totalorder %s19, 0
      %p98 = por %p96, %p97
      %s100 = sadd.s32 %s99, 1
      %p103 = scmp.eq.s32.totalorder %s13, 2
      %p104 = scmp.ne.s32.totalorder %s99, %s101
      %p105 = scmp.eq.s32.totalorder %s13, 0
      %p106 = por %p104, %p105
      %p107 = scmp.ne.s32.totalorder %s99, %s101
      %p108 = scmp.eq.s32.totalorder %s18, 2
      %p109 = por %p107, %p108
      %p110 = scmp.ne.s32.totalorder %s101, %s102
      %p111 = scmp.eq.s32.totalorder %s18, 0
      %p112 = por %p110, %p111
      %p113 = scmp.ne.s32.totalorder %s101, %s102
      %p114 = scmp.eq.s32.totalorder %s19, 2
      %p115 = por %p113, %p114
      %p117 = scmp.ne.s32.totalorder %s102, %s116
      %p118 = scmp.eq.s32.totalorder %s19, 0
      %p119 = por %p117, %p118
      %p120 = scmp.le.s32.totalorder 1, %s13
      %p121 = scmp.lt.s32.totalorder %s13, 4
      %p122 = pnand %p120, %p121
      %p123 = pneg %p122
      // Predicated region
      $region9: #{tpu_custom_call.1} parent=5 // pred_check
        _
      $region10: #{tpu_custom_call.1} parent=5 // pred_check_branch
        %125 = sbr.rel (%p122) target = $region12
      $region11: #{tpu_custom_call.1} parent=5 // pred_region
        %s126 = ssub.s32 %s13, 1
      $region12: #{tpu_custom_call.1} parent=5 // pred_fallthru
        _
      %p127 = scmp.lt.s32.totalorder %s13, 3
      // Predicated region
      $region13: #{tpu_custom_call.1} parent=5 // pred_check
        %p128 = pneg %p127
      $region14: #{tpu_custom_call.1} parent=5 // pred_check_branch
        %130 = sbr.rel (%p128) target = $region16
      $region15: #{tpu_custom_call.1} parent=5 // pred_region
        // Predicated region
        $region17: #{tpu_custom_call.1} parent=15 // pred_check
          %p131 = pneg %p33
        $region18: #{tpu_custom_call.1} parent=15 // pred_check_branch
          %133 = sbr.rel (%p131) target = $region20
        $region19: #{tpu_custom_call.1} parent=15 // pred_region
          %p134 = scmp.lt.s32.totalorder %s13, 2
          %s135 = scalar_select %p134, %s13, 2
          %s136 = smul.addr %s135, 8
          %s137 = scalar_lea.vmem %s0, %s136
        $region20: #{tpu_custom_call.1} parent=15 // pred_fallthru
          _
        // Predicated region
        $region21: #{tpu_custom_call.1} parent=15 // pred_check
          %p138 = pneg %p59
        $region22: #{tpu_custom_call.1} parent=15 // pred_check_branch
          %140 = sbr.rel (%p138) target = $region24
        $region23: #{tpu_custom_call.1} parent=15 // pred_region
          %s141 = sand.u32 %s49, 1
          %s142 = scalar_lea.sflag [#allocation4], %s141
          %s143 = sand.u32 %s49, 1
          %s144 = smul.addr %s143, 8
          %s145 = scalar_lea.vmem [#allocation3], %s144
          %s147 = ssub.s32 128, 128
          %148 = vsyncadd %s142, %s147
          %s149 = smul.addr %s13, 128
          %s150 = scalar_lea.hbm %s1, %s149
          %s152 = sshll.u32 %s145, 4
          %s153 = int_to_ptr.vmem [resolvable:$true] %s152
          %155 = dma.hbm_to_vmem [thread:$0]  %s150, 128, %s153, %s142
        $region24: #{tpu_custom_call.1} parent=15 // pred_fallthru
          _
        // Predicated region
        $region25: #{tpu_custom_call.1} parent=15 // pred_check
          %p156 = pneg %p85
        $region26: #{tpu_custom_call.1} parent=15 // pred_check_branch
          %158 = sbr.rel (%p156) target = $region28
        $region27: #{tpu_custom_call.1} parent=15 // pred_region
          %p159 = scmp.lt.s32.totalorder %s13, 2
          %s160 = scalar_select %p159, %s13, 2
          %s161 = smul.addr %s160, 8
          %s162 = scalar_lea.vmem %s2, %s161
        $region28: #{tpu_custom_call.1} parent=15 // pred_fallthru
          _
      $region16: #{tpu_custom_call.1} parent=5 // pred_fallthru
        _
      %p163 = scmp.le.s32.totalorder 1, %s13
      %p164 = scmp.lt.s32.totalorder %s13, 4
      %p165 = pnand %p163, %p164
      %p166 = pneg %p165
      // Predicated region
      $region29: #{tpu_custom_call.1} parent=5 // pred_check
        _
      $region30: #{tpu_custom_call.1} parent=5 // pred_check_branch
        %168 = sbr.rel (%p165) target = $region32
      $region31: #{tpu_custom_call.1} parent=5 // pred_region
        %s169 = ssub.s32 %s13, 1
        %s170 = sand.u32 %s52, 1
        %s171 = scalar_lea.sflag [#allocation4], %s170
        %s172 = sand.u32 %s52, 1
        %s173 = smul.addr %s172, 8
        %s174 = scalar_lea.vmem [#allocation3], %s173
        // Predicated region
        $region33: #{tpu_custom_call.1} parent=31 // pred_check
          %p175 = pneg %p65
        $region34: #{tpu_custom_call.1} parent=31 // pred_check_branch
          %177 = sbr.rel (%p175) target = $region36
        $region35: #{tpu_custom_call.1} parent=31 // pred_region
          %178 = dma.done %s171, 128
        $region36: #{tpu_custom_call.1} parent=31 // pred_fallthru
          _
        %p179 = scmp.lt.s32.totalorder %s18, 2
        %s180 = scalar_select %p179, %s18, 2
        %s181 = smul.addr %s180, 8
        %s182 = scalar_lea.vmem %s0, %s181
        %p183 = pneg %p39
        %p184 = pneg %p36
        %s185 = sand.u32 %s52, 1
        %s186 = scalar_lea.sflag [#allocation4], %s185
        %s187 = sand.u32 %s52, 1
        %s188 = smul.addr %s187, 8
        %s189 = scalar_lea.vmem [#allocation3], %s188
        %p190 = pneg %p65
        %p191 = pneg %p62
        %p192 = scmp.lt.s32.totalorder %s18, 2
        %s193 = scalar_select %p192, %s18, 2
        %s194 = smul.addr %s193, 8
        %s195 = scalar_lea.vmem %s2, %s194
        %p196 = pneg %p91
        %p197 = pneg %p88
        %p198 = pneg %p112
        %p199 = pneg %p109
        %p200 = scmp.lt.s32.totalorder %s18, 2
        %s201 = scalar_select %p200, %s18, 2
        %s202 = smul.addr %s201, 8
        %s203 = scalar_lea.vmem %s0, %s202
        %p204 = scmp.lt.s32.totalorder %s18, 2
        %s205 = scalar_select %p204, %s18, 2
        %s206 = smul.addr %s205, 8
        %s207 = scalar_lea.vmem %s2, %s206
        %p208 = scmp.eq.s32.totalorder %s18, 0
        // Predicated region
        $region37: #{tpu_custom_call.1} parent=31 // pred_check
          %p209 = pneg %p208
        $region38: #{tpu_custom_call.1} parent=31 // pred_check_branch
          %211 = sbr.rel (%p209) target = $region40
        $region39: #{tpu_custom_call.1} parent=31 // pred_region
          %s212 = scalar_lea.smem [#allocation2], 0
          %213 = sst [smem:[%s212]] 0.0
        $region40: #{tpu_custom_call.1} parent=31 // pred_fallthru
          _
        %v214 = vld [vmem:[%s203] sm:$0xff]
        %v215 = vld [vmem:[%s174] sm:$0xff]
        %s216 = smul.u32 %s18, 8
        %v217 = vlaneseq
        %v218 = vshrl.u32 %v217, 7
        %v219 = vstv %s216
        %v220 = vadd.s32 %v219, %v218
        %vm221 = vcmp.lt.s32.totalorder %v220, 20
        %v222 = vmul.f32 %v214, 0.33333334
        %v223 = vmul.f32 %v215, 0.33333334
        %224 = vmax.xlane.f32.xlu0 %v222
        %v225 = vpop.xlane.xlu0 %224
        %v226 = vsub.f32 %v222, %v225
        %227 = vmax.xlane.f32.xlu0 %v223
        %v228 = vpop.xlane.xlu0 %227
        %v229 = vsub.f32 %v223, %v228
        %v230 = vmul.f32 %v229, 1.442695
        %v231 = vpow.pop %v230
        %v232 = vmul.f32 %v226, 1.442695
        %v233 = vpow.pop %v232
        %234 = vadd.xlane.f32.xlu0 %v233
        %v235 = vpop.xlane.xlu0 %234
        %236 = vadd.xlane.f32.xlu0 %v231
        %v237 = vpop.xlane.xlu0 %236
        %v238 = vsub.f32 %v229, %v226
        %v239 = vmul.f32 %v231, %v238
        %240 = vadd.xlane.f32.xlu0 %v239
        %v241 = vpop.xlane.xlu0 %240
        %v242 = vrcp.pop %v237
        %v243 = vmul.f32 %v241, %v242
        %v244 = vlog2.pop %v235
        %v245 = vmul.f32 %v244, 0.6931472
        %v246 = vadd.f32 %v243, %v245
        %v247 = vlog2.pop %v237
        %v248 = vmul.f32 %v247, 0.6931472
        %v249 = vsub.f32 %v246, %v248
        %250 = vmax.xlane.f32.xlu0 %v214
        %v251 = vpop.xlane.xlu0 %250
        %v252 = vsub.f32 %v214, %v251
        %v253 = vmul.f32 %v252, 1.442695
        %v254 = vpow.pop %v253
        %255 = vadd.xlane.f32.xlu0 %v254
        %v256 = vpop.xlane.xlu0 %255
        %v257 = vlog2.pop %v256
        %v258 = vmul.f32 %v257, 0.6931472
        %v259 = vadd.f32 %v251, %v258
        %v260 = vld [vmem:[%s207] sm:$0xff]
        %v261 = vlaneseq
        %v262 = vand.u32 %v261, 127
        %263 = vset.pattern.permute.xlu0 0
        %264 = vperm.xlu0 %263, %v260
        %v265 = vpop.permute.xlu0 %264
        %vm266 = vcmp.eq.s32.totalorder %v262, %v265
        %v267 = vsel %vm266, %v214, 0.0
        %268 = vadd.xlane.f32.xlu0 %v267
        %v269 = vpop.xlane.xlu0 %268
        %270 = vadd.xlane.f32.xlu0 %v214
        %v271 = vpop.xlane.xlu0 %270
        %v272 = vmul.f32 %v269, 0.9
        %v273 = vsub.f32 %v259, %v272
        %v274 = vmul.f32 %v271, 0.00078125
        %v275 = vsub.f32 %v273, %v274
        %v276 = vmul.f32 %v275, 0.5
        %v277 = vmul.f32 %v249, 0.5
        %v278 = vadd.f32 %v276, %v277
        %v279 = vsel %vm221, %v278, 0.0
        %vm280 = vcmask 7168
        %v281 = vsel %vm280, %v279, 0.0
        %282 = vadd.xlane.f32.xlu0 %v281
        %v283 = vpop.xlane.xlu0 %282
        %v284 = vrot.slane %v283, 4
        %v285 = vadd.f32 %v283, %v284
        %v286 = vrot.slane %v285, 2
        %v287 = vadd.f32 %v285, %v286
        %v288 = vrot.slane %v287, 1
        %v289 = vadd.f32 %v287, %v288
        %s290 = vtos %v289
        %s291 = sld [smem:[#allocation2]]
        %s292 = sadd.f32 %s291, %s290
        %s293 = scalar_lea.smem [#allocation2], 0
        %294 = sst [smem:[%s293]] %s292
        %p295 = scmp.eq.s32.totalorder %s18, 2
        // Predicated region
        $region41: #{tpu_custom_call.1} parent=31 // pred_check
          %p296 = pneg %p295
        $region42: #{tpu_custom_call.1} parent=31 // pred_check_branch
          %298 = sbr.rel (%p296) target = $region44
        $region43: #{tpu_custom_call.1} parent=31 // pred_region
          %s299 = sld [smem:[#allocation2]]
          %s300 = smul.f32 %s299, 0.05
          %s301 = scalar_lea.smem [#allocation6], 0
          %302 = sst [smem:[%s301]] %s300
        $region44: #{tpu_custom_call.1} parent=31 // pred_fallthru
          _
        // Predicated region
        $region45: #{tpu_custom_call.1} parent=31 // pred_check
          %p303 = pneg %p109
        $region46: #{tpu_custom_call.1} parent=31 // pred_check_branch
          %305 = sbr.rel (%p303) target = $region48
        $region47: #{tpu_custom_call.1} parent=31 // pred_region
          %s307 = ssub.s32 16, 16
          %308 = vsyncadd [#allocation5], %s307
          %311 = dma.smem_to_hbm [#allocation6], 16, %s3, [#allocation5]
        $region48: #{tpu_custom_call.1} parent=31 // pred_fallthru
          _
        // Predicated region
        $region49: #{tpu_custom_call.1} parent=31 // pred_check
          %p312 = pneg %p109
        $region50: #{tpu_custom_call.1} parent=31 // pred_check_branch
          %314 = sbr.rel (%p312) target = $region52
        $region51: #{tpu_custom_call.1} parent=31 // pred_region
          %315 = dma.done [#allocation5], 16
        $region52: #{tpu_custom_call.1} parent=31 // pred_fallthru
          _
        %316 = sfence
      $region32: #{tpu_custom_call.1} parent=5 // pred_fallthru
        _
      %p317 = scmp.le.s32.totalorder 2, %s13
      // Predicated region
      $region53: #{tpu_custom_call.1} parent=5 // pred_check
        %p318 = pneg %p317
      $region54: #{tpu_custom_call.1} parent=5 // pred_check_branch
        %320 = sbr.rel (%p318) target = $region56
      $region55: #{tpu_custom_call.1} parent=5 // pred_region
        %s321 = ssub.s32 %s13, 2
      $region56: #{tpu_custom_call.1} parent=5 // pred_fallthru
        _
    $region6: #{tpu_custom_call.1} parent=1 // loop_footer
      %s17 = sadd.s32 1, %s13
    $region7: #{tpu_custom_call.1} parent=1 // loop_footer_branch
      %12 = sbr.rel target = $region3
    $region8: #{tpu_custom_call.1} parent=1 // loop_exit
      _
    %322 = vsyncpa [#allocation4], 1
    %s323 = scalar_lea.sflag [#allocation4], 1
    %324 = vsyncpa %s323, 1
    %325 = vsyncpa [#allocation5], 1
    %s326 = scalar_lea.sflag [#allocation5], 1
    %327 = vsyncpa %s326, 1

</llo_original>
